<compile_context>
chip_gen: v6e
topology: v6e:2x2x1
jax: 0.10.0
libtpu: 0.0.40
codegen_flags: <defaults>
</compile_context>

<pallas_src>
import jax
import jax.numpy as jnp
import numpy as np
from jax.experimental import pallas as pl
from jax.experimental.pallas import tpu as pltpu

LANE = 128  # lane-dense padded width of the final layer / output


# -----------------------------------------------------------------------------
# Glue: dsda for a projective (homography) warp.
# TODO(synk): exact pixel-coordinate convention of warp.calc_dsda_projective is
# not available; using |det(m)| / (m20*x + m21*y + m22)^3 on an integer grid.
# -----------------------------------------------------------------------------
def calc_dsda_projective(sizes, m):
    h, w = sizes
    y, x = jnp.meshgrid(
        jnp.arange(h, dtype=jnp.float32),
        jnp.arange(w, dtype=jnp.float32),
        indexing="ij",
    )
    denom = m[2, 0] * x + m[2, 1] * y + m[2, 2]
    det = jnp.abs(jnp.linalg.det(m))
    return (det / (denom ** 3)).reshape(-1)  # (h*w,)


# -----------------------------------------------------------------------------
# Pallas kernel: fused 4-layer MLP + softmax over a point tile.
# -----------------------------------------------------------------------------
def _sampler_kernel(x_ref, wa_ref, wb_ref, out_ref):
    """x_ref : (T, 8)  bf16 packed features [tl(2), br(2), dsda, 0, 0, 0]
    wa_ref: (8+2F+pad, F) f32 packed [W1(8 rows); W2(F); W3(F); b1; b2; b3; pad]
    wb_ref: (F+pad, 128)  f32 packed [W4 (zero cols >= P); b4 (-1e9 cols >= P); pad]
    out_ref: (T, 128) f32 softmax weights (lanes >= n_pyramids come out as 0).
    """
    f = wa_ref.shape[1]
    x = x_ref[...]  # (T, 8) bf16

    # Static slices of the packed weight blobs (loads, then bf16 cast for MXU).
    w1 = wa_ref[0:8, :].astype(jnp.bfloat16)            # (8, F)
    w2 = wa_ref[8:8 + f, :].astype(jnp.bfloat16)        # (F, F)
    w3 = wa_ref[8 + f:8 + 2 * f, :].astype(jnp.bfloat16)
    nb = 8 + 2 * f
    b1 = wa_ref[nb + 0:nb + 1, :]                        # (1, F) f32
    b2 = wa_ref[nb + 1:nb + 2, :]
    b3 = wa_ref[nb + 2:nb + 3, :]
    w4 = wb_ref[0:f, :].astype(jnp.bfloat16)             # (F, 128)
    b4 = wb_ref[f:f + 1, :]                              # (1, 128), -1e9 in pad lanes

    # Layer 1: fused single matmul over the packed 8-wide feature block.
    h = jnp.dot(x, w1, preferred_element_type=jnp.float32) + b1
    h = jnp.maximum(h, 0.0)
    h = jnp.dot(h.astype(jnp.bfloat16), w2, preferred_element_type=jnp.float32) + b2
    h = jnp.maximum(h, 0.0)
    h = jnp.dot(h.astype(jnp.bfloat16), w3, preferred_element_type=jnp.float32) + b3
    h = jnp.maximum(h, 0.0)
    logits = jnp.dot(h.astype(jnp.bfloat16), w4,
                     preferred_element_type=jnp.float32) + b4   # (T, 128)

    # Softmax over the lane axis; padded lanes hold -1e9 so exp() underflows to 0
    # and the denominator is unchanged. Division goes to the EUP (approx recip).
    mx = jnp.max(logits, axis=-1, keepdims=True)
    e = jnp.exp(logits - mx)
    denom = jnp.sum(e, axis=-1, keepdims=True)
    out_ref[...] = e * pl.reciprocal(denom, approx=True)


# -----------------------------------------------------------------------------
# Parameter packing: 10 small arrays -> 2 blobs (2 DMA descriptors in the kernel).
# -----------------------------------------------------------------------------
def pack_params(params, n_feats, n_pyramids, lane=LANE):
    (w1tl, w1br, w1d, b1, w2, b2, w3, b3, w4, b4) = params
    f = n_feats
    w1p = jnp.concatenate(
        [w1tl, w1br, w1d, jnp.zeros((3, f), jnp.float32)], axis=0)   # (8, F)
    wa = jnp.concatenate([w1p, w2, w3, b1, b2, b3], axis=0)          # (8+2F+3, F)
    wa = jnp.pad(wa, ((0, (-wa.shape[0]) % 8), (0, 0)))

    w4p = jnp.pad(w4, ((0, 0), (0, lane - n_pyramids)))              # (F, 128)
    b4p = jnp.pad(b4, ((0, 0), (0, lane - n_pyramids)),
                  constant_values=-1e9)                              # (1, 128)
    wb = jnp.concatenate([w4p, b4p], axis=0)
    wb = jnp.pad(wb, ((0, (-wb.shape[0]) % 8), (0, 0)))
    return wa.astype(jnp.float32), wb.astype(jnp.float32)


def _pick_tile(n, tile):
    # Ensure at least two grid blocks when possible so both v7x TensorCores get
    # work; keep the tile a multiple of 8 sublanes. No-op on v5e/v6e correctness.
    half = (((n + 1) // 2) + 7) // 8 * 8
    return max(8, min(tile, half))


def _run_sampler_mlp(x8, wa, wb, n_pyramids, *, tile=2048):
    """x8: (N, 8) bf16 packed features -> softmax weights (N, n_pyramids) f32."""
    n = x8.shape[0]
    t = _pick_tile(n, tile)
    n_pad = pl.cdiv(n, t) * t
    x8p = jnp.pad(x8, ((0, n_pad - n), (0, 0)))

    out = pl.pallas_call(
        _sampler_kernel,
        out_shape=jax.ShapeDtypeStruct((n_pad, LANE), jnp.float32),
        grid_spec=pltpu.PrefetchScalarGridSpec(
            num_scalar_prefetch=0,
            grid=(n_pad // t,),
            in_specs=[
                pl.BlockSpec((t, 8), lambda i: (i, 0)),
                pl.BlockSpec(wa.shape, lambda i: (0, 0)),
                pl.BlockSpec(wb.shape, lambda i: (0, 0)),
            ],
            out_specs=pl.BlockSpec((t, LANE), lambda i: (i, 0)),
        ),
        compiler_params=pltpu.CompilerParams(
            dimension_semantics=("parallel",),
        ),
    )(x8p, wa, wb)
    return out[:n, :n_pyramids]


# -----------------------------------------------------------------------------
# Module-level wrapper (default config: n_pyramids=3, n_feats=32, m_feats=0,
# no_position=False, log_scale=False; feats=None).
# -----------------------------------------------------------------------------
def multi_scale_sampler_forward(grid, yi, m, sizes, params, *, n_pyramids=3,
                                n_feats=32, log_scale=False, tile=2048):
    h, w = sizes
    dsda = calc_dsda_projective(sizes, m)[yi][:, None]   # (N, 1)
    if log_scale:
        dsda = jnp.log(dsda + 1e-8)

    g = grid.T.astype(jnp.float32)                       # (N, 2)
    tl = g - jnp.floor(g)
    br = 1.0 - tl
    n = g.shape[0]
    # Packed (N, 8) feature block: [tl_x, tl_y, br_x, br_y, dsda, 0, 0, 0].
    x8 = jnp.concatenate(
        [tl, br, dsda, jnp.zeros((n, 3), jnp.float32)], axis=1
    ).astype(jnp.bfloat16)

    wa, wb = pack_params(params, n_feats, n_pyramids)
    w_soft = _run_sampler_mlp(x8, wa, wb, n_pyramids, tile=tile)   # (N, P) f32

    # TODO(synk): for production-sized H*W, the dsda gather and this scatter could
    # be folded into the kernel via scalar prefetch of yi; kept as XLA glue here.
    w_spatial = jnp.zeros((h * w, n_pyramids), w_soft.dtype).at[yi].set(w_soft)
    return w_spatial.reshape(1, 1, h, w, n_pyramids)


# -----------------------------------------------------------------------------
# Deterministic parameter init (PyTorch nn.Linear default: U(-1/sqrt(fan_in), +)).
# Weights stored as (in, out); first layer split to match [tl(2), br(2), dsda(1)].
# -----------------------------------------------------------------------------
def init_params(key, n_inputs=5, n_feats=32, n_pyramids=3):
    def linear(k, fan_in, fan_out):
        kw, kb = jax.random.split(k)
        bound = 1.0 / np.sqrt(fan_in)
        w = jax.random.uniform(kw, (fan_in, fan_out), jnp.float32, -bound, bound)
        b = jax.random.uniform(kb, (1, fan_out), jnp.float32, -bound, bound)
        return w, b

    k1, k2, k3, k4 = jax.random.split(key, 4)
    w1, b1 = linear(k1, n_inputs, n_feats)
    w2, b2 = linear(k2, n_feats, n_feats)
    w3, b3 = linear(k3, n_feats, n_feats)
    w4, b4 = linear(k4, n_feats, n_pyramids)
    w1tl, w1br, w1d = w1[0:2], w1[2:4], w1[4:5]
    return (w1tl, w1br, w1d, b1, w2, b2, w3, b3, w4, b4)


# -----------------------------------------------------------------------------
# Pure-JAX reference for a correctness check.
# -----------------------------------------------------------------------------
def reference_forward(grid, yi, m, sizes, params, n_pyramids=3):
    (w1tl, w1br, w1d, b1, w2, b2, w3, b3, w4, b4) = params
    h, w = sizes
    dsda = calc_dsda_projective(sizes, m)[yi][:, None]
    g = grid.T
    tl = g - jnp.floor(g)
    br = 1.0 - tl
    x = jnp.concatenate([tl, br, dsda], axis=1)
    w1 = jnp.concatenate([w1tl, w1br, w1d], axis=0)
    hh = jax.nn.relu(x @ w1 + b1)
    hh = jax.nn.relu(hh @ w2 + b2)
    hh = jax.nn.relu(hh @ w3 + b3)
    logits = hh @ w4 + b4
    ws = jax.nn.softmax(logits, axis=1)
    out = jnp.zeros((h * w, n_pyramids), ws.dtype).at[yi].set(ws)
    return out.reshape(1, 1, h, w, n_pyramids)


if __name__ == "__main__":
    key = jax.random.PRNGKey(0)
    k_params, k_grid, k_yi = jax.random.split(key, 3)

    n_pyramids, n_feats = 3, 32
    sizes = (16, 16)
    n_points = 200  # non-multiple of 8/tile to exercise padding + 2-block grid

    params = init_params(k_params, n_inputs=5, n_feats=n_feats,
                         n_pyramids=n_pyramids)

    # grid: (2, N) fractional source coordinates; yi: unique target indices.
    grid = jax.random.uniform(k_grid, (2, n_points), jnp.float32, 0.0, 15.0)
    yi = jax.random.permutation(k_yi, sizes[0] * sizes[1])[:n_points]
    # Mildly perspective 3x3 transform.
    m = jnp.array(
        [[1.0, 0.01, 0.5],
         [0.02, 1.0, -0.3],
         [0.001, 0.002, 1.0]], dtype=jnp.float32)

    out = multi_scale_sampler_forward(
        grid, yi, m, sizes, params, n_pyramids=n_pyramids, n_feats=n_feats)
    out = jax.block_until_ready(out)

    ref = jax.block_until_ready(
        reference_forward(grid, yi, m, sizes, params, n_pyramids=n_pyramids))

    assert out.shape == (1, 1, sizes[0], sizes[1], n_pyramids), out.shape
    np.testing.assert_allclose(np.asarray(out), np.asarray(ref),
                               rtol=1e-2, atol=1e-2)
    print("KERNEL_OK")
</pallas_src>

<mosaic_0001>
module attributes {stable_mosaic.version = 11 : i64} {
  func.func @_sampler_kernel(%arg0: i32, %arg1: memref<104x8xbf16, #tpu.memory_space<vmem>>, %arg2: memref<80x32xf32, #tpu.memory_space<vmem>>, %arg3: memref<40x128xf32, #tpu.memory_space<vmem>>, %arg4: memref<104x128xf32, #tpu.memory_space<vmem>>) attributes {dimension_semantics = [#tpu.dimension_semantics<parallel>], iteration_bounds = array<i64: 2>, scalar_prefetch = 0 : i64, scratch_operands = 0 : i64, tpu.core_type = #tpu.core_type<tc>, window_params = [{transform_indices = @transform_0, window_bounds = array<i64: 104, 8>}, {pipeline_mode = #tpu.pipeline_mode<synchronous>, transform_indices = @transform_1, window_bounds = array<i64: 80, 32>}, {pipeline_mode = #tpu.pipeline_mode<synchronous>, transform_indices = @transform_2, window_bounds = array<i64: 40, 128>}, {transform_indices = @transform_3, window_bounds = array<i64: 104, 128>}]} {
    %c0 = arith.constant 0 : index
    %c0_0 = arith.constant 0 : index
    %0 = vector.load %arg1[%c0, %c0_0] : memref<104x8xbf16, #tpu.memory_space<vmem>>, vector<104x8xbf16>
    %c0_1 = arith.constant 0 : index
    %c0_2 = arith.constant 0 : index
    %1 = vector.load %arg2[%c0_1, %c0_2] : memref<80x32xf32, #tpu.memory_space<vmem>>, vector<8x32xf32>
    %2 = arith.truncf %1 : vector<8x32xf32> to vector<8x32xbf16>
    %c8 = arith.constant 8 : index
    %c0_3 = arith.constant 0 : index
    %3 = vector.load %arg2[%c8, %c0_3] : memref<80x32xf32, #tpu.memory_space<vmem>>, vector<32x32xf32>
    %4 = arith.truncf %3 : vector<32x32xf32> to vector<32x32xbf16>
    %c40 = arith.constant 40 : index
    %c0_4 = arith.constant 0 : index
    %5 = vector.load %arg2[%c40, %c0_4] : memref<80x32xf32, #tpu.memory_space<vmem>>, vector<32x32xf32>
    %6 = arith.truncf %5 : vector<32x32xf32> to vector<32x32xbf16>
    %c72 = arith.constant 72 : index
    %c0_5 = arith.constant 0 : index
    %7 = vector.load %arg2[%c72, %c0_5] : memref<80x32xf32, #tpu.memory_space<vmem>>, vector<1x32xf32>
    %c73 = arith.constant 73 : index
    %c0_6 = arith.constant 0 : index
    %8 = vector.load %arg2[%c73, %c0_6] : memref<80x32xf32, #tpu.memory_space<vmem>>, vector<1x32xf32>
    %c74 = arith.constant 74 : index
    %c0_7 = arith.constant 0 : index
    %9 = vector.load %arg2[%c74, %c0_7] : memref<80x32xf32, #tpu.memory_space<vmem>>, vector<1x32xf32>
    %c0_8 = arith.constant 0 : index
    %c0_9 = arith.constant 0 : index
    %10 = vector.load %arg3[%c0_8, %c0_9] : memref<40x128xf32, #tpu.memory_space<vmem>>, vector<32x128xf32>
    %11 = arith.truncf %10 : vector<32x128xf32> to vector<32x128xbf16>
    %c32 = arith.constant 32 : index
    %c0_10 = arith.constant 0 : index
    %12 = vector.load %arg3[%c32, %c0_10] : memref<40x128xf32, #tpu.memory_space<vmem>>, vector<1x128xf32>
    %cst = arith.constant dense<0.000000e+00> : vector<104x32xf32>
    %13 = tpu.matmul %0, %2, %cst {dimension_numbers = #tpu.dot_dimension_numbers<[1], [0], [0], [1], [0, 0, 1, 1], [], []>} : vector<104x8xbf16>, vector<8x32xbf16>, vector<104x32xf32> -> vector<104x32xf32>
    %14 = vector.broadcast %7 : vector<1x32xf32> to vector<104x32xf32>
    %15 = arith.addf %13, %14 : vector<104x32xf32>
    %cst_11 = arith.constant 0.000000e+00 : f32
    %16 = vector.broadcast %cst_11 : f32 to vector<104x32xf32>
    %17 = arith.maximumf %15, %16 : vector<104x32xf32>
    %18 = arith.truncf %17 : vector<104x32xf32> to vector<104x32xbf16>
    %cst_12 = arith.constant dense<0.000000e+00> : vector<104x32xf32>
    %19 = tpu.matmul %18, %4, %cst_12 {dimension_numbers = #tpu.dot_dimension_numbers<[1], [0], [0], [1], [0, 0, 1, 1], [], []>} : vector<104x32xbf16>, vector<32x32xbf16>, vector<104x32xf32> -> vector<104x32xf32>
    %20 = vector.broadcast %8 : vector<1x32xf32> to vector<104x32xf32>
    %21 = arith.addf %19, %20 : vector<104x32xf32>
    %cst_13 = arith.constant 0.000000e+00 : f32
    %22 = vector.broadcast %cst_13 : f32 to vector<104x32xf32>
    %23 = arith.maximumf %21, %22 : vector<104x32xf32>
    %24 = arith.truncf %23 : vector<104x32xf32> to vector<104x32xbf16>
    %cst_14 = arith.constant dense<0.000000e+00> : vector<104x32xf32>
    %25 = tpu.matmul %24, %6, %cst_14 {dimension_numbers = #tpu.dot_dimension_numbers<[1], [0], [0], [1], [0, 0, 1, 1], [], []>} : vector<104x32xbf16>, vector<32x32xbf16>, vector<104x32xf32> -> vector<104x32xf32>
    %26 = vector.broadcast %9 : vector<1x32xf32> to vector<104x32xf32>
    %27 = arith.addf %25, %26 : vector<104x32xf32>
    %cst_15 = arith.constant 0.000000e+00 : f32
    %28 = vector.broadcast %cst_15 : f32 to vector<104x32xf32>
    %29 = arith.maximumf %27, %28 : vector<104x32xf32>
    %30 = arith.truncf %29 : vector<104x32xf32> to vector<104x32xbf16>
    %cst_16 = arith.constant dense<0.000000e+00> : vector<104x128xf32>
    %31 = tpu.matmul %30, %11, %cst_16 {dimension_numbers = #tpu.dot_dimension_numbers<[1], [0], [0], [1], [0, 0, 1, 1], [], []>} : vector<104x32xbf16>, vector<32x128xbf16>, vector<104x128xf32> -> vector<104x128xf32>
    %32 = vector.broadcast %12 : vector<1x128xf32> to vector<104x128xf32>
    %33 = arith.addf %31, %32 : vector<104x128xf32>
    %cst_17 = arith.constant dense<0xFF800000> : vector<104xf32>
    %34 = vector.multi_reduction <maximumf>, %33, %cst_17 [1] : vector<104x128xf32> to vector<104xf32>
    %35 = vector.shape_cast %34 : vector<104xf32> to vector<104x1xf32>
    %36 = vector.broadcast %35 : vector<104x1xf32> to vector<104x128xf32>
    %37 = arith.subf %33, %36 : vector<104x128xf32>
    %38 = math.exp %37 : vector<104x128xf32>
    %cst_18 = arith.constant dense<0.000000e+00> : vector<104xf32>
    %39 = vector.multi_reduction <add>, %38, %cst_18 [1] : vector<104x128xf32> to vector<104xf32>
    %40 = vector.shape_cast %39 : vector<104xf32> to vector<104x1xf32>
    %41 = tpu.reciprocal %40 {approx = true} : vector<104x1xf32> -> vector<104x1xf32>
    %42 = vector.broadcast %41 : vector<104x1xf32> to vector<104x128xf32>
    %43 = arith.mulf %38, %42 : vector<104x128xf32>
    %c0_19 = arith.constant 0 : index
    %c0_20 = arith.constant 0 : index
    %44 = vector.load %arg4[%c0_19, %c0_20] : memref<104x128xf32, #tpu.memory_space<vmem>>, vector<104x128xf32>
    tpu.vector_store %arg4[%c0_19, %c0_20], %43 {strides = array<i32>} : memref<104x128xf32, #tpu.memory_space<vmem>>, vector<104x128xf32>,
    return
  }
  func.func @transform_0(%arg0: i32) -> (i32, i32) {
    %c0_i32 = arith.constant 0 : i32
    %c0_i32_0 = arith.constant 0 : i32
    return %arg0, %c0_i32 : i32, i32
  }
  func.func @transform_1(%arg0: i32) -> (i32, i32) {
    %c0_i32 = arith.constant 0 : i32
    %c0_i32_0 = arith.constant 0 : i32
    %c0_i32_1 = arith.constant 0 : i32
    return %c0_i32, %c0_i32_0 : i32, i32
  }
  func.func @transform_2(%arg0: i32) -> (i32, i32) {
    %c0_i32 = arith.constant 0 : i32
    %c0_i32_0 = arith.constant 0 : i32
    %c0_i32_1 = arith.constant 0 : i32
    return %c0_i32, %c0_i32_0 : i32, i32
  }
  func.func @transform_3(%arg0: i32) -> (i32, i32) {
    %c0_i32 = arith.constant 0 : i32
    %c0_i32_0 = arith.constant 0 : i32
    return %arg0, %c0_i32 : i32, i32
  }
}

</mosaic_0001>

<llo_original>
// kernel: tpu_custom_call.1
$region0: #{tpu_custom_call.1}
  #allocation0 [shape = 'u32[]', space=smem, size = 0x4, offset = 0x4, fixed_abs, tag = 'smem constant byte address 0x4 - core index']
  #allocation1 [shape = 'u32[144,128]{1,0:T(1,128)}', space=vmem, size = 0x12000, scoped, tag = 'internal scratch']
  %s0 = inlined_call_operand.vmem [shape: bf16[208,8], index: 0, kind: input, shape index: {}]
  %s1 = inlined_call_operand.vmem [shape: f32[80,32], index: 1, kind: input, shape index: {}]
  %s2 = inlined_call_operand.vmem [shape: f32[40,128], index: 2, kind: input, shape index: {}]
  %s3 = inlined_call_operand.hbm [shape: f32[208,128], index: 3, kind: output, shape index: {}]
  %s4 = sld [smem:[#allocation0]]
  $region45: #{tpu_custom_call.1} parent=0
    _
  %s6 = ssub.s32 1, %s4
  %s7 = scalar_select 0, %s6, %s4
  $region1: #{tpu_custom_call.1} parent=0
    #allocation2 [shape = 'u8[106496]{0}', space=vmem, size = 0x1a000, scoped, tag = 'output window, operand 0']
    #allocation3 [shape = 's32[2]{0}', space=sflag, size = 0x8, scoped, tag = 'scoped memory for tpu_custom_call.1']
    %8 = vsyncpa [#allocation3], 0
    %s9 = scalar_lea.sflag [#allocation3], 1
    %10 = vsyncpa %s9, 0
    loop: start=0, step=1, limit=4
    $region2: #{tpu_custom_call.1} parent=1 // loop_pre_header
      _
    $region3: #{tpu_custom_call.1} parent=1 // loop_header
      %s12 = sphi 0, %s16
      %p13 = scmp.ge.s32.totalorder %s12, 4
      %s22 = sphi 0, %s24
      %s25 = sphi 0, %s22
      %s26 = sphi 0, %s25
      %s42 = sphi 0, %s26
      %s46 = sphi 0, %s46
      %s48 = sphi 0, %s46
      %s49 = sphi 0, %s48
      %s63 = sphi 0, %s49
      %s67 = sphi 0, %s67
      %s69 = sphi 0, %s67
      %s70 = sphi 0, %s69
      %s84 = sphi 0, %s70
      %s90 = sphi 0, %s92
      %s93 = sphi 0, %s90
      %s94 = sphi 0, %s93
      %s110 = sphi 0, %s94
    $region4: #{tpu_custom_call.1} parent=1 // loop_header_branch
      %15 = sbr.rel (%p13) target = $region8
    $region5: #{tpu_custom_call.1} parent=1 // loop_body
      %s17 = ssub.s32 %s12, 1
      %s18 = ssub.s32 %s12, 2
      %s19 = sadd.s32 %s12, 1
      %s20 = ssub.s32 %s12, %s19
      %p21 = scmp.eq.s32.totalorder %s20, 0
      %s23 = sadd.s32 %s22, 1
      %s24 = scalar_select %p21, %s22, %s23
      %p27 = pneg %p21
      %p28 = scmp.eq.s32.totalorder %s12, 1
      %p29 = por %p27, %p28
      %p30 = scmp.ne.s32.totalorder %s22, %s25
      %p31 = scmp.eq.s32.totalorder %s12, 0
      %p32 = por %p30, %p31
      %p33 = scmp.ne.s32.totalorder %s22, %s25
      %p34 = scmp.eq.s32.totalorder %s17, 1
      %p35 = por %p33, %p34
      %p36 = scmp.ne.s32.totalorder %s25, %s26
      %p37 = scmp.eq.s32.totalorder %s17, 0
      %p38 = por %p36, %p37
      %p39 = scmp.ne.s32.totalorder %s25, %s26
      %p40 = scmp.eq.s32.totalorder %s18, 1
      %p41 = por %p39, %p40
      %p43 = scmp.ne.s32.totalorder %s26, %s42
      %p44 = scmp.eq.s32.totalorder %s18, 0
      %p45 = por %p43, %p44
      %s47 = sadd.s32 %s46, 1
      %p50 = scmp.eq.s32.totalorder %s12, 1
      %p51 = scmp.ne.s32.totalorder %s46, %s48
      %p52 = scmp.eq.s32.totalorder %s12, 0
      %p53 = por %p51, %p52
      %p54 = scmp.ne.s32.totalorder %s46, %s48
      %p55 = scmp.eq.s32.totalorder %s17, 1
      %p56 = por %p54, %p55
      %p57 = scmp.ne.s32.totalorder %s48, %s49
      %p58 = scmp.eq.s32.totalorder %s17, 0
      %p59 = por %p57, %p58
      %p60 = scmp.ne.s32.totalorder %s48, %s49
      %p61 = scmp.eq.s32.totalorder %s18, 1
      %p62 = por %p60, %p61
      %p64 = scmp.ne.s32.totalorder %s49, %s63
      %p65 = scmp.eq.s32.totalorder %s18, 0
      %p66 = por %p64, %p65
      %s68 = sadd.s32 %s67, 1
      %p71 = scmp.eq.s32.totalorder %s12, 1
      %p72 = scmp.ne.s32.totalorder %s67, %s69
      %p73 = scmp.eq.s32.totalorder %s12, 0
      %p74 = por %p72, %p73
      %p75 = scmp.ne.s32.totalorder %s67, %s69
      %p76 = scmp.eq.s32.totalorder %s17, 1
      %p77 = por %p75, %p76
      %p78 = scmp.ne.s32.totalorder %s69, %s70
      %p79 = scmp.eq.s32.totalorder %s17, 0
      %p80 = por %p78, %p79
      %p81 = scmp.ne.s32.totalorder %s69, %s70
      %p82 = scmp.eq.s32.totalorder %s18, 1
      %p83 = por %p81, %p82
      %p85 = scmp.ne.s32.totalorder %s70, %s84
      %p86 = scmp.eq.s32.totalorder %s18, 0
      %p87 = por %p85, %p86
      %s88 = ssub.s32 %s12, %s19
      %p89 = scmp.eq.s32.totalorder %s88, 0
      %s91 = sadd.s32 %s90, 1
      %s92 = scalar_select %p89, %s90, %s91
      %p95 = pneg %p89
      %p96 = scmp.eq.s32.totalorder %s12, 1
      %p97 = por %p95, %p96
      %p98 = scmp.ne.s32.totalorder %s90, %s93
      %p99 = scmp.eq.s32.totalorder %s12, 0
      %p100 = por %p98, %p99
      %p101 = scmp.ne.s32.totalorder %s90, %s93
      %p102 = scmp.eq.s32.totalorder %s17, 1
      %p103 = por %p101, %p102
      %p104 = scmp.ne.s32.totalorder %s93, %s94
      %p105 = scmp.eq.s32.totalorder %s17, 0
      %p106 = por %p104, %p105
      %p107 = scmp.ne.s32.totalorder %s93, %s94
      %p108 = scmp.eq.s32.totalorder %s18, 1
      %p109 = por %p107, %p108
      %p111 = scmp.ne.s32.totalorder %s94, %s110
      %p112 = scmp.eq.s32.totalorder %s18, 0
      %p113 = por %p111, %p112
      %p114 = scmp.le.s32.totalorder 1, %s12
      %p115 = scmp.lt.s32.totalorder %s12, 3
      %p116 = pnand %p114, %p115
      %p117 = pneg %p116
      // Predicated region
      $region9: #{tpu_custom_call.1} parent=5 // pred_check
        _
      $region10: #{tpu_custom_call.1} parent=5 // pred_check_branch
        %119 = sbr.rel (%p116) target = $region12
      $region11: #{tpu_custom_call.1} parent=5 // pred_region
        %s120 = ssub.s32 %s12, 1
        // Predicated region
        $region13: #{tpu_custom_call.1} parent=11 // pred_check
          %p121 = pneg %p59
        $region14: #{tpu_custom_call.1} parent=11 // pred_check_branch
          %123 = sbr.rel (%p121) target = $region16
        $region15: #{tpu_custom_call.1} parent=11 // pred_region
          _
        $region16: #{tpu_custom_call.1} parent=11 // pred_fallthru
          _
        // Predicated region
        $region17: #{tpu_custom_call.1} parent=11 // pred_check
          %p124 = pneg %p80
        $region18: #{tpu_custom_call.1} parent=11 // pred_check_branch
          %126 = sbr.rel (%p124) target = $region20
        $region19: #{tpu_custom_call.1} parent=11 // pred_region
          _
        $region20: #{tpu_custom_call.1} parent=11 // pred_fallthru
          _
      $region12: #{tpu_custom_call.1} parent=5 // pred_fallthru
        _
      %p127 = scmp.lt.s32.totalorder %s12, 2
      // Predicated region
      $region21: #{tpu_custom_call.1} parent=5 // pred_check
        %p128 = pneg %p127
      $region22: #{tpu_custom_call.1} parent=5 // pred_check_branch
        %130 = sbr.rel (%p128) target = $region24
      $region23: #{tpu_custom_call.1} parent=5 // pred_region
        // Predicated region
        $region25: #{tpu_custom_call.1} parent=23 // pred_check
          %p131 = pneg %p32
        $region26: #{tpu_custom_call.1} parent=23 // pred_check_branch
          %133 = sbr.rel (%p131) target = $region28
        $region27: #{tpu_custom_call.1} parent=23 // pred_region
          %s134 = smul.u32 13, %s12
          %p135 = scmp.lt.s32.totalorder %s134, 25
          %s136 = scalar_select %p135, %s134, 25
          %s137 = smul.addr %s136, 4
          %s138 = scalar_lea.vmem %s0, %s137
          %s139 = smul.u32 13, %s12
        $region28: #{tpu_custom_call.1} parent=23 // pred_fallthru
          _
      $region24: #{tpu_custom_call.1} parent=5 // pred_fallthru
        _
      %p140 = scmp.le.s32.totalorder 1, %s12
      %p141 = scmp.lt.s32.totalorder %s12, 3
      %p142 = pnand %p140, %p141
      %p143 = pneg %p142
      // Predicated region
      $region29: #{tpu_custom_call.1} parent=5 // pred_check
        _
      $region30: #{tpu_custom_call.1} parent=5 // pred_check_branch
        %145 = sbr.rel (%p142) target = $region32
      $region31: #{tpu_custom_call.1} parent=5 // pred_region
        %s146 = ssub.s32 %s12, 1
        %s147 = smul.u32 13, %s17
        %p148 = scmp.lt.s32.totalorder %s147, 25
        %s149 = scalar_select %p148, %s147, 25
        %s150 = smul.addr %s149, 4
        %s151 = scalar_lea.vmem %s0, %s150
        %p152 = pneg %p38
        %p153 = pneg %p35
        %p154 = pneg %p59
        %p155 = pneg %p56
        %p156 = pneg %p80
        %p157 = pneg %p77
        %p158 = pneg %p106
        %p159 = pneg %p103
        %s160 = sand.u32 %s93, 1
        %s161 = scalar_lea.sflag [#allocation3], %s160
        %s162 = sand.u32 %s93, 1
        %s163 = smul.addr %s162, 104
        %s164 = scalar_lea.vmem [#allocation2], %s163
        %s165 = smul.u32 13, %s17
        %p166 = scmp.lt.s32.totalorder %s165, 25
        %s167 = scalar_select %p166, %s165, 25
        %s168 = smul.addr %s167, 4
        %s169 = scalar_lea.vmem %s0, %s168
        %s170 = smul.u32 13, %s17
        %s171 = smul.u32 13, %s17
        %v173 = vld [vmem:[%s169] sm:$0xf]
        %v174 = vld [vmem:[%s169 + $0x4] sm:$0xf]
        %v175 = vld [vmem:[%s169 + $0x8] sm:$0xf]
        %v176 = vld [vmem:[%s169 + $0xc] sm:$0xf]
        %v177 = vld [vmem:[%s169 + $0x10] sm:$0xf]
        %v178 = vld [vmem:[%s169 + $0x14] sm:$0xf]
        %v179 = vld [vmem:[%s169 + $0x18] sm:$0xf]
        %v180 = vld [vmem:[%s169 + $0x1c] sm:$0xf]
        %v181 = vld [vmem:[%s169 + $0x20] sm:$0xf]
        %v182 = vld [vmem:[%s169 + $0x24] sm:$0xf]
        %v183 = vld [vmem:[%s169 + $0x28] sm:$0xf]
        %v184 = vld [vmem:[%s169 + $0x2c] sm:$0xf]
        %v185 = vld [vmem:[%s169 + $0x30] sm:$0xf]
        %v186 = vld [vmem:[%s1] sm:$0xff]
        %v187 = vpack.c.bf16 %v186, %v186
        %v188 = vld [vmem:[%s1 + $0x8] sm:$0xff]
        %v189 = vld [vmem:[%s1 + $0x10] sm:$0xff]
        %v190 = vld [vmem:[%s1 + $0x18] sm:$0xff]
        %v191 = vld [vmem:[%s1 + $0x20] sm:$0xff]
        %v192 = vpack.c.bf16 %v189, %v188
        %v193 = vpack.c.bf16 %v191, %v190
        %v194 = vld [vmem:[%s1 + $0x28] sm:$0xff]
        %v195 = vld [vmem:[%s1 + $0x30] sm:$0xff]
        %v196 = vld [vmem:[%s1 + $0x38] sm:$0xff]
        %v197 = vld [vmem:[%s1 + $0x40] sm:$0xff]
        %v198 = vpack.c.bf16 %v195, %v194
        %v199 = vpack.c.bf16 %v197, %v196
        %v200 = vld [vmem:[%s1 + $0x48] sm:$0x1]
        %v201 = vld [vmem:[%s1 + $0x49] sm:$0x1]
        %v202 = vld [vmem:[%s1 + $0x4a] sm:$0x1]
        %v203 = vld [vmem:[%s2] sm:$0xff]
        %v204 = vld [vmem:[%s2 + $0x8] sm:$0xff]
        %v205 = vld [vmem:[%s2 + $0x10] sm:$0xff]
        %v206 = vld [vmem:[%s2 + $0x18] sm:$0xff]
        %v207 = vpack.c.bf16 %v204, %v203
        %v208 = vpack.c.bf16 %v206, %v205
        %v209 = vld [vmem:[%s2 + $0x20] sm:$0x1]
        %v210 = vlaneseq
        %v211 = vshrl.u32 %v210, 7
        %v212 = vsub.s32 0, %v211
        %v213 = vrot.slane %v200, %v212
        %v227 = vunpack.c.l.b16 %v173
        %v228 = vunpack.c.l.b16 %v174
        %v229 = vunpack.c.l.b16 %v175
        %v230 = vunpack.c.l.b16 %v176
        %v231 = vunpack.c.l.b16 %v177
        %v232 = vunpack.c.l.b16 %v178
        %v233 = vunpack.c.l.b16 %v179
        %v234 = vunpack.c.l.b16 %v180
        %v235 = vunpack.c.l.b16 %v181
        %v236 = vunpack.c.l.b16 %v182
        %v237 = vunpack.c.l.b16 %v183
        %v238 = vunpack.c.l.b16 %v184
        %v239 = vunpack.c.l.b16 %v185
        %v240 = vpack.c.b16 %v228, %v227
        %v241 = vpack.c.b16 %v230, %v229
        %v242 = vpack.c.b16 %v232, %v231
        %v243 = vpack.c.b16 %v234, %v233
        %v244 = vpack.c.b16 %v236, %v235
        %v245 = vpack.c.b16 %v238, %v237
        %v246 = vpack.c.b16 %v239, %v239
        %vm247 = vcmask 64512
        %v249 = vsel %vm247, %v240, 0
        %v252 = vsel %vm247, %v241, 0
        %v255 = vsel %vm247, %v242, 0
        %v258 = vsel %vm247, %v243, 0
        %v261 = vsel %vm247, %v244, 0
        %v264 = vsel %vm247, %v245, 0
        %v267 = vsel %vm247, %v246, 0
        %vm269 = vcmask 1043456
        %v271 = vsel %vm269, %v187, 0
        %273 = vmatprep.subr.bf16.mxu0 0
        %274 = vmatpush1.bf16.msra.mxu0 0
        %275 = vmatprep.subr.bf16.mxu0 0
        %276 = vmatpush1.bf16.msra.mxu0 0
        %277 = vmatprep.subr.bf16.mxu0 0
        %278 = vmatpush1.bf16.msra.mxu0 0
        %279 = vmatprep.subr.bf16.mxu0 0
        %280 = vmatpush1.bf16.msra.mxu0 0
        %281 = vmatprep.subr.bf16.mxu0 0
        %282 = vmatpush1.bf16.msra.mxu0 0
        %283 = vmatprep.subr.bf16.mxu0 0
        %284 = vmatpush1.bf16.msra.mxu0 0
        %285 = vmatprep.subr.bf16.mxu0 0
        %286 = vmatpush1.bf16.msra.mxu0 0
        %287 = vmatprep.subr.bf16.mxu0 0
        %288 = vmatpush1.bf16.msra.mxu0 %v271
        %289 = vmatprep.subr.bf16.mxu0 0
        %290 = vmatpush2.bf16.msra.mxu0 0
        %291 = vmatprep.subr.bf16.mxu0 0
        %292 = vmatpush2.bf16.msra.mxu0 0
        %293 = vmatprep.subr.bf16.mxu0 0
        %294 = vmatpush2.bf16.msra.mxu0 0
        %295 = vmatprep.subr.bf16.mxu0 0
        %296 = vmatpush2.bf16.msra.mxu0 0
        %297 = vmatprep.subr.bf16.mxu0 0
        %298 = vmatpush2.bf16.msra.mxu0 0
        %299 = vmatprep.subr.bf16.mxu0 0
        %300 = vmatpush2.bf16.msra.mxu0 0
        %301 = vmatprep.subr.bf16.mxu0 0
        %302 = vmatpush2.bf16.msra.mxu0 0
        %303 = vmatprep.subr.bf16.mxu0 0
        %304 = vmatpush2.bf16.msra.mxu0 0
        %305 = vmatprep.mubr.bf16.mxu0 0
        %306 = vmatmul.mubr.bf16.gmra.mxu0 %v249
        %v307 = vpop.f32.mrf.mxu0
        %v308 = vadd.f32 %v213, %v307
        %v309 = vpop.f32.mrf.mxu0
        %v310 = vpop.f32.mrf.mxu0
        %v311 = vadd.f32 %v213, %v310
        %v312 = vpop.f32.mrf.mxu0
        %313 = vmatprep.mubr.bf16.mxu0 0
        %314 = vmatmul.mubr.bf16.gmra.mxu0 %v252
        %v315 = vpop.f32.mrf.mxu0
        %v316 = vadd.f32 %v213, %v315
        %v317 = vpop.f32.mrf.mxu0
        %v318 = vpop.f32.mrf.mxu0
        %v319 = vadd.f32 %v213, %v318
        %v320 = vpop.f32.mrf.mxu0
        %321 = vmatprep.mubr.bf16.mxu0 0
        %322 = vmatmul.mubr.bf16.gmra.mxu0 %v255
        %v323 = vpop.f32.mrf.mxu0
        %v324 = vadd.f32 %v213, %v323
        %v325 = vpop.f32.mrf.mxu0
        %v326 = vpop.f32.mrf.mxu0
        %v327 = vadd.f32 %v213, %v326
        %v328 = vpop.f32.mrf.mxu0
        %329 = vmatprep.mubr.bf16.mxu0 0
        %330 = vmatmul.mubr.bf16.gmra.mxu0 %v258
        %v331 = vpop.f32.mrf.mxu0
        %v332 = vadd.f32 %v213, %v331
        %v333 = vpop.f32.mrf.mxu0
        %v334 = vpop.f32.mrf.mxu0
        %v335 = vadd.f32 %v213, %v334
        %v336 = vpop.f32.mrf.mxu0
        %337 = vmatprep.mubr.bf16.mxu0 0
        %338 = vmatmul.mubr.bf16.gmra.mxu0 %v261
        %v339 = vpop.f32.mrf.mxu0
        %v340 = vadd.f32 %v213, %v339
        %v341 = vpop.f32.mrf.mxu0
        %v342 = vpop.f32.mrf.mxu0
        %v343 = vadd.f32 %v213, %v342
        %v344 = vpop.f32.mrf.mxu0
        %345 = vmatprep.mubr.bf16.mxu0 0
        %346 = vmatmul.mubr.bf16.gmra.mxu0 %v264
        %v347 = vpop.f32.mrf.mxu0
        %v348 = vadd.f32 %v213, %v347
        %v349 = vpop.f32.mrf.mxu0
        %v350 = vpop.f32.mrf.mxu0
        %v351 = vadd.f32 %v213, %v350
        %v352 = vpop.f32.mrf.mxu0
        %353 = vmatprep.mubr.bf16.mxu0 0
        %354 = vmatmul.mubr.bf16.gmra.mxu0 %v267
        %v355 = vpop.f32.mrf.mxu0
        %v356 = vadd.f32 %v213, %v355
        %v357 = vpop.f32.mrf.mxu0
        %v358 = vpop.f32.mrf.mxu0
        %v359 = vpop.f32.mrf.mxu0
        %360 = vdwg.mxu0
        %v361 = vmax.f32 %v308, 0.0
        %v362 = vmax.f32 %v311, 0.0
        %v363 = vmax.f32 %v316, 0.0
        %v364 = vmax.f32 %v319, 0.0
        %v365 = vmax.f32 %v324, 0.0
        %v366 = vmax.f32 %v327, 0.0
        %v367 = vmax.f32 %v332, 0.0
        %v368 = vmax.f32 %v335, 0.0
        %v369 = vmax.f32 %v340, 0.0
        %v370 = vmax.f32 %v343, 0.0
        %v371 = vmax.f32 %v348, 0.0
        %v372 = vmax.f32 %v351, 0.0
        %v373 = vmax.f32 %v356, 0.0
        %v374 = vpack.c.bf16 %v362, %v361
        %v375 = vpack.c.bf16 %v364, %v363
        %v376 = vpack.c.bf16 %v366, %v365
        %v377 = vpack.c.bf16 %v368, %v367
        %v378 = vpack.c.bf16 %v370, %v369
        %v379 = vpack.c.bf16 %v372, %v371
        %v380 = vpack.c.bf16 %v373, %v373
        %v381 = vlaneseq
        %v382 = vshrl.u32 %v381, 7
        %v383 = vsub.s32 0, %v382
        %v384 = vrot.slane %v201, %v383
        %vm385 = vcmask 261120
        %v387 = vsel %vm385, %v374, 0
        %v390 = vsel %vm385, %v375, 0
        %v393 = vsel %vm385, %v376, 0
        %v396 = vsel %vm385, %v377, 0
        %v399 = vsel %vm385, %v378, 0
        %v402 = vsel %vm385, %v379, 0
        %v405 = vsel %vm385, %v380, 0
        %407 = vmatprep.subr.bf16.mxu0 0
        %408 = vmatpush1.bf16.msra.mxu0 0
        %409 = vmatprep.subr.bf16.mxu0 0
        %410 = vmatpush1.bf16.msra.mxu0 0
        %411 = vmatprep.subr.bf16.mxu0 0
        %412 = vmatpush1.bf16.msra.mxu0 0
        %413 = vmatprep.subr.bf16.mxu0 0
        %414 = vmatpush1.bf16.msra.mxu0 0
        %415 = vmatprep.subr.bf16.mxu0 0
        %416 = vmatpush1.bf16.msra.mxu0 0
        %417 = vmatprep.subr.bf16.mxu0 0
        %418 = vmatpush1.bf16.msra.mxu0 0
        %419 = vmatprep.subr.bf16.mxu0 0
        %420 = vmatpush1.bf16.msra.mxu0 %v193
        %421 = vmatprep.subr.bf16.mxu0 0
        %422 = vmatpush1.bf16.msra.mxu0 %v192
        %423 = vmatprep.subr.bf16.mxu0 0
        %424 = vmatpush2.bf16.msra.mxu0 0
        %425 = vmatprep.subr.bf16.mxu0 0
        %426 = vmatpush2.bf16.msra.mxu0 0
        %427 = vmatprep.subr.bf16.mxu0 0
        %428 = vmatpush2.bf16.msra.mxu0 0
        %429 = vmatprep.subr.bf16.mxu0 0
        %430 = vmatpush2.bf16.msra.mxu0 0
        %431 = vmatprep.subr.bf16.mxu0 0
        %432 = vmatpush2.bf16.msra.mxu0 0
        %433 = vmatprep.subr.bf16.mxu0 0
        %434 = vmatpush2.bf16.msra.mxu0 0
        %435 = vmatprep.subr.bf16.mxu0 0
        %436 = vmatpush2.bf16.msra.mxu0 0
        %437 = vmatprep.subr.bf16.mxu0 0
        %438 = vmatpush2.bf16.msra.mxu0 0
        %439 = vmatprep.mubr.bf16.mxu0 0
        %440 = vmatmul.mubr.bf16.gmra.mxu0 %v387
        %v441 = vpop.f32.mrf.mxu0
        %v442 = vadd.f32 %v384, %v441
        %v443 = vpop.f32.mrf.mxu0
        %v444 = vpop.f32.mrf.mxu0
        %v445 = vadd.f32 %v384, %v444
        %v446 = vpop.f32.mrf.mxu0
        %447 = vmatprep.mubr.bf16.mxu0 0
        %448 = vmatmul.mubr.bf16.gmra.mxu0 %v390
        %v449 = vpop.f32.mrf.mxu0
        %v450 = vadd.f32 %v384, %v449
        %v451 = vpop.f32.mrf.mxu0
        %v452 = vpop.f32.mrf.mxu0
        %v453 = vadd.f32 %v384, %v452
        %v454 = vpop.f32.mrf.mxu0
        %455 = vmatprep.mubr.bf16.mxu0 0
        %456 = vmatmul.mubr.bf16.gmra.mxu0 %v393
        %v457 = vpop.f32.mrf.mxu0
        %v458 = vadd.f32 %v384, %v457
        %v459 = vpop.f32.mrf.mxu0
        %v460 = vpop.f32.mrf.mxu0
        %v461 = vadd.f32 %v384, %v460
        %v462 = vpop.f32.mrf.mxu0
        %463 = vmatprep.mubr.bf16.mxu0 0
        %464 = vmatmul.mubr.bf16.gmra.mxu0 %v396
        %v465 = vpop.f32.mrf.mxu0
        %v466 = vadd.f32 %v384, %v465
        %v467 = vpop.f32.mrf.mxu0
        %v468 = vpop.f32.mrf.mxu0
        %v469 = vadd.f32 %v384, %v468
        %v470 = vpop.f32.mrf.mxu0
        %471 = vmatprep.mubr.bf16.mxu0 0
        %472 = vmatmul.mubr.bf16.gmra.mxu0 %v399
        %v473 = vpop.f32.mrf.mxu0
        %v474 = vadd.f32 %v384, %v473
        %v475 = vpop.f32.mrf.mxu0
        %v476 = vpop.f32.mrf.mxu0
        %v477 = vadd.f32 %v384, %v476
        %v478 = vpop.f32.mrf.mxu0
        %479 = vmatprep.mubr.bf16.mxu0 0
        %480 = vmatmul.mubr.bf16.gmra.mxu0 %v402
        %v481 = vpop.f32.mrf.mxu0
        %v482 = vadd.f32 %v384, %v481
        %v483 = vpop.f32.mrf.mxu0
        %v484 = vpop.f32.mrf.mxu0
        %v485 = vadd.f32 %v384, %v484
        %v486 = vpop.f32.mrf.mxu0
        %487 = vmatprep.mubr.bf16.mxu0 0
        %488 = vmatmul.mubr.bf16.gmra.mxu0 %v405
        %v489 = vpop.f32.mrf.mxu0
        %v490 = vadd.f32 %v384, %v489
        %v491 = vpop.f32.mrf.mxu0
        %v492 = vpop.f32.mrf.mxu0
        %v493 = vpop.f32.mrf.mxu0
        %494 = vdwg.mxu0
        %v495 = vmax.f32 %v442, 0.0
        %v496 = vmax.f32 %v445, 0.0
        %v497 = vmax.f32 %v450, 0.0
        %v498 = vmax.f32 %v453, 0.0
        %v499 = vmax.f32 %v458, 0.0
        %v500 = vmax.f32 %v461, 0.0
        %v501 = vmax.f32 %v466, 0.0
        %v502 = vmax.f32 %v469, 0.0
        %v503 = vmax.f32 %v474, 0.0
        %v504 = vmax.f32 %v477, 0.0
        %v505 = vmax.f32 %v482, 0.0
        %v506 = vmax.f32 %v485, 0.0
        %v507 = vmax.f32 %v490, 0.0
        %v508 = vpack.c.bf16 %v496, %v495
        %v509 = vpack.c.bf16 %v498, %v497
        %v510 = vpack.c.bf16 %v500, %v499
        %v511 = vpack.c.bf16 %v502, %v501
        %v512 = vpack.c.bf16 %v504, %v503
        %v513 = vpack.c.bf16 %v506, %v505
        %v514 = vpack.c.bf16 %v507, %v507
        %v515 = vlaneseq
        %v516 = vshrl.u32 %v515, 7
        %v517 = vsub.s32 0, %v516
        %v518 = vrot.slane %v202, %v517
        %v520 = vsel %vm385, %v508, 0
        %v523 = vsel %vm385, %v509, 0
        %v526 = vsel %vm385, %v510, 0
        %v529 = vsel %vm385, %v511, 0
        %v532 = vsel %vm385, %v512, 0
        %v535 = vsel %vm385, %v513, 0
        %v538 = vsel %vm385, %v514, 0
        %540 = vmatprep.subr.bf16.mxu0 0
        %541 = vmatpush1.bf16.msra.mxu0 0
        %542 = vmatprep.subr.bf16.mxu0 0
        %543 = vmatpush1.bf16.msra.mxu0 0
        %544 = vmatprep.subr.bf16.mxu0 0
        %545 = vmatpush1.bf16.msra.mxu0 0
        %546 = vmatprep.subr.bf16.mxu0 0
        %547 = vmatpush1.bf16.msra.mxu0 0
        %548 = vmatprep.subr.bf16.mxu0 0
        %549 = vmatpush1.bf16.msra.mxu0 0
        %550 = vmatprep.subr.bf16.mxu0 0
        %551 = vmatpush1.bf16.msra.mxu0 0
        %552 = vmatprep.subr.bf16.mxu0 0
        %553 = vmatpush1.bf16.msra.mxu0 %v199
        %554 = vmatprep.subr.bf16.mxu0 0
        %555 = vmatpush1.bf16.msra.mxu0 %v198
        %556 = vmatprep.subr.bf16.mxu0 0
        %557 = vmatpush2.bf16.msra.mxu0 0
        %558 = vmatprep.subr.bf16.mxu0 0
        %559 = vmatpush2.bf16.msra.mxu0 0
        %560 = vmatprep.subr.bf16.mxu0 0
        %561 = vmatpush2.bf16.msra.mxu0 0
        %562 = vmatprep.subr.bf16.mxu0 0
        %563 = vmatpush2.bf16.msra.mxu0 0
        %564 = vmatprep.subr.bf16.mxu0 0
        %565 = vmatpush2.bf16.msra.mxu0 0
        %566 = vmatprep.subr.bf16.mxu0 0
        %567 = vmatpush2.bf16.msra.mxu0 0
        %568 = vmatprep.subr.bf16.mxu0 0
        %569 = vmatpush2.bf16.msra.mxu0 0
        %570 = vmatprep.subr.bf16.mxu0 0
        %571 = vmatpush2.bf16.msra.mxu0 0
        %572 = vmatprep.mubr.bf16.mxu0 0
        %573 = vmatmul.mubr.bf16.gmra.mxu0 %v520
        %v574 = vpop.f32.mrf.mxu0
        %v575 = vadd.f32 %v518, %v574
        %v576 = vpop.f32.mrf.mxu0
        %v577 = vpop.f32.mrf.mxu0
        %v578 = vadd.f32 %v518, %v577
        %v579 = vpop.f32.mrf.mxu0
        %580 = vmatprep.mubr.bf16.mxu0 0
        %581 = vmatmul.mubr.bf16.gmra.mxu0 %v523
        %v582 = vpop.f32.mrf.mxu0
        %v583 = vadd.f32 %v518, %v582
        %v584 = vpop.f32.mrf.mxu0
        %v585 = vpop.f32.mrf.mxu0
        %v586 = vadd.f32 %v518, %v585
        %v587 = vpop.f32.mrf.mxu0
        %588 = vmatprep.mubr.bf16.mxu0 0
        %589 = vmatmul.mubr.bf16.gmra.mxu0 %v526
        %v590 = vpop.f32.mrf.mxu0
        %v591 = vadd.f32 %v518, %v590
        %v592 = vpop.f32.mrf.mxu0
        %v593 = vpop.f32.mrf.mxu0
        %v594 = vadd.f32 %v518, %v593
        %v595 = vpop.f32.mrf.mxu0
        %596 = vmatprep.mubr.bf16.mxu0 0
        %597 = vmatmul.mubr.bf16.gmra.mxu0 %v529
        %v598 = vpop.f32.mrf.mxu0
        %v599 = vadd.f32 %v518, %v598
        %v600 = vpop.f32.mrf.mxu0
        %v601 = vpop.f32.mrf.mxu0
        %v602 = vadd.f32 %v518, %v601
        %v603 = vpop.f32.mrf.mxu0
        %604 = vmatprep.mubr.bf16.mxu0 0
        %605 = vmatmul.mubr.bf16.gmra.mxu0 %v532
        %v606 = vpop.f32.mrf.mxu0
        %v607 = vadd.f32 %v518, %v606
        %v608 = vpop.f32.mrf.mxu0
        %v609 = vpop.f32.mrf.mxu0
        %v610 = vadd.f32 %v518, %v609
        %v611 = vpop.f32.mrf.mxu0
        %612 = vmatprep.mubr.bf16.mxu0 0
        %613 = vmatmul.mubr.bf16.gmra.mxu0 %v535
        %v614 = vpop.f32.mrf.mxu0
        %v615 = vadd.f32 %v518, %v614
        %v616 = vpop.f32.mrf.mxu0
        %v617 = vpop.f32.mrf.mxu0
        %v618 = vadd.f32 %v518, %v617
        %v619 = vpop.f32.mrf.mxu0
        %620 = vmatprep.mubr.bf16.mxu0 0
        %621 = vmatmul.mubr.bf16.gmra.mxu0 %v538
        %v622 = vpop.f32.mrf.mxu0
        %v623 = vadd.f32 %v518, %v622
        %v624 = vpop.f32.mrf.mxu0
        %v625 = vpop.f32.mrf.mxu0
        %v626 = vpop.f32.mrf.mxu0
        %627 = vdwg.mxu0
        %v628 = vmax.f32 %v575, 0.0
        %v629 = vmax.f32 %v578, 0.0
        %v630 = vmax.f32 %v583, 0.0
        %v631 = vmax.f32 %v586, 0.0
        %v632 = vmax.f32 %v591, 0.0
        %v633 = vmax.f32 %v594, 0.0
        %v634 = vmax.f32 %v599, 0.0
        %v635 = vmax.f32 %v602, 0.0
        %v636 = vmax.f32 %v607, 0.0
        %v637 = vmax.f32 %v610, 0.0
        %v638 = vmax.f32 %v615, 0.0
        %v639 = vmax.f32 %v618, 0.0
        %v640 = vmax.f32 %v623, 0.0
        %v641 = vpack.c.bf16 %v629, %v628
        %v642 = vpack.c.bf16 %v631, %v630
        %v643 = vpack.c.bf16 %v633, %v632
        %v644 = vpack.c.bf16 %v635, %v634
        %v645 = vpack.c.bf16 %v637, %v636
        %v646 = vpack.c.bf16 %v639, %v638
        %v647 = vpack.c.bf16 %v640, %v640
        %v648 = vlaneseq
        %v649 = vshrl.u32 %v648, 7
        %v650 = vsub.s32 0, %v649
        %v651 = vrot.slane %v209, %v650
        %v653 = vsel %vm385, %v641, 0
        %v656 = vsel %vm385, %v642, 0
        %v659 = vsel %vm385, %v643, 0
        %v662 = vsel %vm385, %v644, 0
        %v665 = vsel %vm385, %v645, 0
        %v668 = vsel %vm385, %v646, 0
        %v671 = vsel %vm385, %v647, 0
        %673 = vmatprep.subr.bf16.mxu0 0
        %674 = vmatpush1.bf16.msra.mxu0 0
        %675 = vmatprep.subr.bf16.mxu0 0
        %676 = vmatpush1.bf16.msra.mxu0 0
        %677 = vmatprep.subr.bf16.mxu0 0
        %678 = vmatpush1.bf16.msra.mxu0 0
        %679 = vmatprep.subr.bf16.mxu0 0
        %680 = vmatpush1.bf16.msra.mxu0 0
        %681 = vmatprep.subr.bf16.mxu0 0
        %682 = vmatpush1.bf16.msra.mxu0 0
        %683 = vmatprep.subr.bf16.mxu0 0
        %684 = vmatpush1.bf16.msra.mxu0 0
        %685 = vmatprep.subr.bf16.mxu0 0
        %686 = vmatpush1.bf16.msra.mxu0 %v208
        %687 = vmatprep.subr.bf16.mxu0 0
        %688 = vmatpush1.bf16.msra.mxu0 %v207
        %689 = vmatprep.subr.bf16.mxu0 0
        %690 = vmatpush2.bf16.msra.mxu0 0
        %691 = vmatprep.subr.bf16.mxu0 0
        %692 = vmatpush2.bf16.msra.mxu0 0
        %693 = vmatprep.subr.bf16.mxu0 0
        %694 = vmatpush2.bf16.msra.mxu0 0
        %695 = vmatprep.subr.bf16.mxu0 0
        %696 = vmatpush2.bf16.msra.mxu0 0
        %697 = vmatprep.subr.bf16.mxu0 0
        %698 = vmatpush2.bf16.msra.mxu0 0
        %699 = vmatprep.subr.bf16.mxu0 0
        %700 = vmatpush2.bf16.msra.mxu0 0
        %701 = vmatprep.subr.bf16.mxu0 0
        %702 = vmatpush2.bf16.msra.mxu0 0
        %703 = vmatprep.subr.bf16.mxu0 0
        %704 = vmatpush2.bf16.msra.mxu0 0
        %705 = vmatprep.mubr.bf16.mxu0 0
        %706 = vmatmul.mubr.bf16.gmra.mxu0 %v653
        %v707 = vpop.f32.mrf.mxu0
        %v708 = vadd.f32 %v651, %v707
        %v709 = vpop.f32.mrf.mxu0
        %v710 = vpop.f32.mrf.mxu0
        %v711 = vadd.f32 %v651, %v710
        %v712 = vpop.f32.mrf.mxu0
        %713 = vmatprep.mubr.bf16.mxu0 0
        %714 = vmatmul.mubr.bf16.gmra.mxu0 %v656
        %v715 = vpop.f32.mrf.mxu0
        %v716 = vadd.f32 %v651, %v715
        %v717 = vpop.f32.mrf.mxu0
        %v718 = vpop.f32.mrf.mxu0
        %v719 = vadd.f32 %v651, %v718
        %v720 = vpop.f32.mrf.mxu0
        %721 = vmatprep.mubr.bf16.mxu0 0
        %722 = vmatmul.mubr.bf16.gmra.mxu0 %v659
        %v723 = vpop.f32.mrf.mxu0
        %v724 = vadd.f32 %v651, %v723
        %v725 = vpop.f32.mrf.mxu0
        %v726 = vpop.f32.mrf.mxu0
        %v727 = vadd.f32 %v651, %v726
        %v728 = vpop.f32.mrf.mxu0
        %729 = vmatprep.mubr.bf16.mxu0 0
        %730 = vmatmul.mubr.bf16.gmra.mxu0 %v662
        %v731 = vpop.f32.mrf.mxu0
        %v732 = vadd.f32 %v651, %v731
        %v733 = vpop.f32.mrf.mxu0
        %v734 = vpop.f32.mrf.mxu0
        %v735 = vadd.f32 %v651, %v734
        %v736 = vpop.f32.mrf.mxu0
        %737 = vmatprep.mubr.bf16.mxu0 0
        %738 = vmatmul.mubr.bf16.gmra.mxu0 %v665
        %v739 = vpop.f32.mrf.mxu0
        %v740 = vadd.f32 %v651, %v739
        %v741 = vpop.f32.mrf.mxu0
        %v742 = vpop.f32.mrf.mxu0
        %v743 = vadd.f32 %v651, %v742
        %v744 = vpop.f32.mrf.mxu0
        %745 = vmatprep.mubr.bf16.mxu0 0
        %746 = vmatmul.mubr.bf16.gmra.mxu0 %v668
        %v747 = vpop.f32.mrf.mxu0
        %v748 = vadd.f32 %v651, %v747
        %v749 = vpop.f32.mrf.mxu0
        %v750 = vpop.f32.mrf.mxu0
        %v751 = vadd.f32 %v651, %v750
        %v752 = vpop.f32.mrf.mxu0
        %753 = vmatprep.mubr.bf16.mxu0 0
        %754 = vmatmul.mubr.bf16.gmra.mxu0 %v671
        %v755 = vpop.f32.mrf.mxu0
        %v756 = vadd.f32 %v651, %v755
        %v757 = vpop.f32.mrf.mxu0
        %v758 = vpop.f32.mrf.mxu0
        %v759 = vpop.f32.mrf.mxu0
        %760 = vdwg.mxu0
        %761 = vmax.xlane.f32.xlu0 %v708
        %v762 = vpop.xlane.xlu0 %761
        %763 = vmax.xlane.f32.xlu0 %v711
        %v764 = vpop.xlane.xlu0 %763
        %765 = vmax.xlane.f32.xlu0 %v716
        %v766 = vpop.xlane.xlu0 %765
        %767 = vmax.xlane.f32.xlu0 %v719
        %v768 = vpop.xlane.xlu0 %767
        %769 = vmax.xlane.f32.xlu0 %v724
        %v770 = vpop.xlane.xlu0 %769
        %771 = vmax.xlane.f32.xlu0 %v727
        %v772 = vpop.xlane.xlu0 %771
        %773 = vmax.xlane.f32.xlu0 %v732
        %v774 = vpop.xlane.xlu0 %773
        %775 = vmax.xlane.f32.xlu0 %v735
        %v776 = vpop.xlane.xlu0 %775
        %777 = vmax.xlane.f32.xlu0 %v740
        %v778 = vpop.xlane.xlu0 %777
        %779 = vmax.xlane.f32.xlu0 %v743
        %v780 = vpop.xlane.xlu0 %779
        %781 = vmax.xlane.f32.xlu0 %v748
        %v782 = vpop.xlane.xlu0 %781
        %783 = vmax.xlane.f32.xlu0 %v751
        %v784 = vpop.xlane.xlu0 %783
        %785 = vmax.xlane.f32.xlu0 %v756
        %v786 = vpop.xlane.xlu0 %785
        %v787 = vsub.f32 %v708, %v762
        %v788 = vsub.f32 %v711, %v764
        %v789 = vsub.f32 %v716, %v766
        %v790 = vsub.f32 %v719, %v768
        %v791 = vsub.f32 %v724, %v770
        %v792 = vsub.f32 %v727, %v772
        %v793 = vsub.f32 %v732, %v774
        %v794 = vsub.f32 %v735, %v776
        %v795 = vsub.f32 %v740, %v778
        %v796 = vsub.f32 %v743, %v780
        %v797 = vsub.f32 %v748, %v782
        %v798 = vsub.f32 %v751, %v784
        %v799 = vsub.f32 %v756, %v786
        %v800 = vmul.f32 %v787, 1.442695
        %v801 = vpow.pop %v800
        %v802 = vmul.f32 %v788, 1.442695
        %v803 = vpow.pop %v802
        %v804 = vmul.f32 %v789, 1.442695
        %v805 = vpow.pop %v804
        %v806 = vmul.f32 %v790, 1.442695
        %v807 = vpow.pop %v806
        %v808 = vmul.f32 %v791, 1.442695
        %v809 = vpow.pop %v808
        %v810 = vmul.f32 %v792, 1.442695
        %v811 = vpow.pop %v810
        %v812 = vmul.f32 %v793, 1.442695
        %v813 = vpow.pop %v812
        %v814 = vmul.f32 %v794, 1.442695
        %v815 = vpow.pop %v814
        %v816 = vmul.f32 %v795, 1.442695
        %v817 = vpow.pop %v816
        %v818 = vmul.f32 %v796, 1.442695
        %v819 = vpow.pop %v818
        %v820 = vmul.f32 %v797, 1.442695
        %v821 = vpow.pop %v820
        %v822 = vmul.f32 %v798, 1.442695
        %v823 = vpow.pop %v822
        %v824 = vmul.f32 %v799, 1.442695
        %v825 = vpow.pop %v824
        %826 = vadd.xlane.f32.xlu0 %v801
        %v827 = vpop.xlane.xlu0 %826
        %828 = vadd.xlane.f32.xlu0 %v803
        %v829 = vpop.xlane.xlu0 %828
        %830 = vadd.xlane.f32.xlu0 %v805
        %v831 = vpop.xlane.xlu0 %830
        %832 = vadd.xlane.f32.xlu0 %v807
        %v833 = vpop.xlane.xlu0 %832
        %834 = vadd.xlane.f32.xlu0 %v809
        %v835 = vpop.xlane.xlu0 %834
        %836 = vadd.xlane.f32.xlu0 %v811
        %v837 = vpop.xlane.xlu0 %836
        %838 = vadd.xlane.f32.xlu0 %v813
        %v839 = vpop.xlane.xlu0 %838
        %840 = vadd.xlane.f32.xlu0 %v815
        %v841 = vpop.xlane.xlu0 %840
        %842 = vadd.xlane.f32.xlu0 %v817
        %v843 = vpop.xlane.xlu0 %842
        %844 = vadd.xlane.f32.xlu0 %v819
        %v845 = vpop.xlane.xlu0 %844
        %846 = vadd.xlane.f32.xlu0 %v821
        %v847 = vpop.xlane.xlu0 %846
        %848 = vadd.xlane.f32.xlu0 %v823
        %v849 = vpop.xlane.xlu0 %848
        %850 = vadd.xlane.f32.xlu0 %v825
        %v851 = vpop.xlane.xlu0 %850
        %v852 = vrcp.pop %v827
        %v853 = vrcp.pop %v829
        %v854 = vrcp.pop %v831
        %v855 = vrcp.pop %v833
        %v856 = vrcp.pop %v835
        %v857 = vrcp.pop %v837
        %v858 = vrcp.pop %v839
        %v859 = vrcp.pop %v841
        %v860 = vrcp.pop %v843
        %v861 = vrcp.pop %v845
        %v862 = vrcp.pop %v847
        %v863 = vrcp.pop %v849
        %v864 = vrcp.pop %v851
        %v865 = vmul.f32 %v801, %v852
        %v866 = vmul.f32 %v803, %v853
        %v867 = vmul.f32 %v805, %v854
        %v868 = vmul.f32 %v807, %v855
        %v869 = vmul.f32 %v809, %v856
        %v870 = vmul.f32 %v811, %v857
        %v871 = vmul.f32 %v813, %v858
        %v872 = vmul.f32 %v815, %v859
        %v873 = vmul.f32 %v817, %v860
        %v874 = vmul.f32 %v819, %v861
        %v875 = vmul.f32 %v821, %v862
        %v876 = vmul.f32 %v823, %v863
        %v877 = vmul.f32 %v825, %v864
        %878 = vst [vmem:[%s164] sm:$0xff] %v865
        %879 = vst [vmem:[%s164 + $0x8] sm:$0xff] %v866
        %880 = vst [vmem:[%s164 + $0x10] sm:$0xff] %v867
        %881 = vst [vmem:[%s164 + $0x18] sm:$0xff] %v868
        %882 = vst [vmem:[%s164 + $0x20] sm:$0xff] %v869
        %883 = vst [vmem:[%s164 + $0x28] sm:$0xff] %v870
        %884 = vst [vmem:[%s164 + $0x30] sm:$0xff] %v871
        %885 = vst [vmem:[%s164 + $0x38] sm:$0xff] %v872
        %886 = vst [vmem:[%s164 + $0x40] sm:$0xff] %v873
        %887 = vst [vmem:[%s164 + $0x48] sm:$0xff] %v874
        %888 = vst [vmem:[%s164 + $0x50] sm:$0xff] %v875
        %889 = vst [vmem:[%s164 + $0x58] sm:$0xff] %v876
        %890 = vst [vmem:[%s164 + $0x60] sm:$0xff] %v877
        %s891 = sand.u32 %s93, 1
        %s892 = scalar_lea.sflag [#allocation3], %s891
        %s893 = sand.u32 %s93, 1
        %s894 = smul.addr %s893, 104
        %s895 = scalar_lea.vmem [#allocation2], %s894
        // Predicated region
        $region33: #{tpu_custom_call.1} parent=31 // pred_check
          %p896 = pneg %p103
        $region34: #{tpu_custom_call.1} parent=31 // pred_check_branch
          %898 = sbr.rel (%p896) target = $region36
        $region35: #{tpu_custom_call.1} parent=31 // pred_region
          %s899 = smul.u32 13, %s17
          %s901 = ssub.s32 1664, 1664
          %902 = vsyncadd %s892, %s901
          %s903 = smul.addr %s899, 128
          %s904 = scalar_lea.hbm %s3, %s903
          %s905 = sshll.u32 %s895, 4
          %s906 = int_to_ptr.vmem [resolvable:$true] %s905
          %911 = dma.vmem_to_hbm [thread:$0]  %s906, 1664, %s904, %s892, 128, 128, 8
        $region36: #{tpu_custom_call.1} parent=31 // pred_fallthru
          _
      $region32: #{tpu_custom_call.1} parent=5 // pred_fallthru
        _
      %p912 = scmp.le.s32.totalorder 2, %s12
      // Predicated region
      $region37: #{tpu_custom_call.1} parent=5 // pred_check
        %p913 = pneg %p912
      $region38: #{tpu_custom_call.1} parent=5 // pred_check_branch
        %915 = sbr.rel (%p913) target = $region40
      $region39: #{tpu_custom_call.1} parent=5 // pred_region
        %s916 = ssub.s32 %s12, 2
        // Predicated region
        $region41: #{tpu_custom_call.1} parent=39 // pred_check
          %p917 = pneg %p109
        $region42: #{tpu_custom_call.1} parent=39 // pred_check_branch
          %919 = sbr.rel (%p917) target = $region44
        $region43: #{tpu_custom_call.1} parent=39 // pred_region
          %s920 = sand.u32 %s94, 1
          %s921 = scalar_lea.sflag [#allocation3], %s920
          %s922 = sand.u32 %s94, 1
          %s923 = smul.addr %s922, 104
          %s924 = scalar_lea.vmem [#allocation2], %s923
          %925 = dma.done %s921, 1664
        $region44: #{tpu_custom_call.1} parent=39 // pred_fallthru
          _
      $region40: #{tpu_custom_call.1} parent=5 // pred_fallthru
        _
    $region6: #{tpu_custom_call.1} parent=1 // loop_footer
      %s16 = sadd.s32 1, %s12
    $region7: #{tpu_custom_call.1} parent=1 // loop_footer_branch
      %11 = sbr.rel target = $region3
    $region8: #{tpu_custom_call.1} parent=1 // loop_exit
      _
    %926 = vsyncpa [#allocation3], 1
    %s927 = scalar_lea.sflag [#allocation3], 1
    %928 = vsyncpa %s927, 1

</llo_original>
